<compile_context>
chip_gen: v7x
topology: tpu7x:2x2x1
jax: 0.10.0
libtpu: 0.0.40
codegen_flags: <defaults>
</compile_context>

<pallas_src>
import functools
import math

import jax
import jax.numpy as jnp
from jax.experimental import pallas as pl
from jax.experimental.pallas import tpu as pltpu


def _round_up(a, b):
    return ((a + b - 1) // b) * b


def _ac_mlp_kernel(
    x_ref,
    w1_ref, b1_ref,
    w2_ref, b2_ref,
    w3_ref, b3_ref,
    wh_ref, bh_ref,
    out_ref,
    *,
    out_dim,
):
    x = x_ref[...]

    # shared_net: 3x (Linear -> ReLU).  MXU dots accumulate in f32; bias add and
    # ReLU stay in f32.
    h = jnp.dot(x, w1_ref[...], preferred_element_type=jnp.float32) + b1_ref[...]
    h = jnp.maximum(h, 0.0)
    h = jnp.dot(h.astype(w2_ref.dtype), w2_ref[...],
                preferred_element_type=jnp.float32) + b2_ref[...]
    h = jnp.maximum(h, 0.0)
    h = jnp.dot(h.astype(w3_ref.dtype), w3_ref[...],
                preferred_element_type=jnp.float32) + b3_ref[...]
    h = jnp.maximum(h, 0.0)

    # Fused actor+critic head: one [tb, 128] matmul, then keep only the useful
    # head_cols lanes (actor logits | critic value | zero pad) -> 8x less
    # writeback traffic for small out_dim.
    head = jnp.dot(h.astype(wh_ref.dtype), wh_ref[...],
                   preferred_element_type=jnp.float32) + bh_ref[...]
    head_cols = out_ref.shape[-1]
    head = head[:, :head_cols]

    lane = jax.lax.broadcasted_iota(jnp.int32, head.shape, 1)
    is_prob = lane < out_dim

    # Softmax over the actor lanes only (padded lanes -> -inf -> prob 0).
    # Exact divide: denom is [tb, 1], essentially free, and keeps
    # sum(probs) == 1 for downstream Categorical sampling / log-probs.
    logits = jnp.where(is_prob, head, jnp.float32(-jnp.inf))
    m = jnp.max(logits, axis=-1, keepdims=True)
    e = jnp.exp(logits - m)
    denom = jnp.sum(e, axis=-1, keepdims=True)
    probs = e / denom

    # Lane out_dim carries the critic value; all remaining pad lanes are 0.
    out_ref[...] = jnp.where(lane == out_dim, head, probs).astype(out_ref.dtype)


def ac_mlp_forward(x, params, *, batch_tile=None, matmul_dtype=jnp.bfloat16):
    """Fused ActCriMLPNetwork forward pass.

    Args:
      x: [B, in_dim] float32.
      params: dict with w1,b1,w2,b2,w3,b3,wa,ba,wc,bc (see init_params).
      batch_tile: rows per grid step (default 4096, rounded to multiple of 8).
      matmul_dtype: dtype of the matmul operands (bfloat16 default, or float32).
    Returns:
      (actor_probs [B, out_dim] f32, critic_value [B, 1] f32)
    """
    B, in_dim = x.shape
    hidden = params["w1"].shape[1]
    out_dim = params["wa"].shape[1]

    HEAD_PAD = 128                       # fused head matmul width (MXU-friendly)
    HID_PAD = _round_up(hidden, 128)     # pad hidden for full lane occupancy
    assert out_dim + 1 <= HEAD_PAD, "out_dim + 1 must fit in one 128-lane slab"
    # Output slab lane width: smallest multiple of 16 holding logits + value.
    head_cols = min(HEAD_PAD, _round_up(out_dim + 1, 16))

    def pad_to(a, shape):
        pads = [(0, t - s) for s, t in zip(a.shape, shape)]
        return jnp.pad(a, pads)

    # Zero-padding the hidden dim is exact under ReLU: padded units get weight 0
    # / bias 0, ReLU(0) = 0, and padded rows of downstream weights are 0.
    w1 = pad_to(params["w1"], (in_dim, HID_PAD)).astype(matmul_dtype)
    b1 = pad_to(params["b1"], (1, HID_PAD)).astype(jnp.float32)
    w2 = pad_to(params["w2"], (HID_PAD, HID_PAD)).astype(matmul_dtype)
    b2 = pad_to(params["b2"], (1, HID_PAD)).astype(jnp.float32)
    w3 = pad_to(params["w3"], (HID_PAD, HID_PAD)).astype(matmul_dtype)
    b3 = pad_to(params["b3"], (1, HID_PAD)).astype(jnp.float32)

    # Fused head weight/bias: [hidden, out_dim] || [hidden, 1], padded to 128.
    wh = jnp.concatenate([params["wa"], params["wc"]], axis=1)
    bh = jnp.concatenate([params["ba"], params["bc"]], axis=1)
    wh = pad_to(wh, (HID_PAD, HEAD_PAD)).astype(matmul_dtype)
    bh = pad_to(bh, (1, HEAD_PAD)).astype(jnp.float32)

    # Batch tiling: big tiles amortize the ~0.35us per-grid-step overhead; the
    # 8192 cap keeps double-buffered tiles + f32 intermediates comfortably
    # under the 48 MiB VMEM limit below (and under v7x's 64 MiB physical VMEM).
    tb_cap = batch_tile if batch_tile is not None else 4096
    tb_cap = max(8, min((tb_cap // 8) * 8, 8192))
    rows = _round_up(B, 8)
    if rows <= tb_cap:
        # One tile would cover the whole batch.  For large batches split into
        # two grid steps so the "parallel" axis can use both v7x TensorCores.
        tb = rows if rows < 1024 else _round_up((rows + 1) // 2, 8)
    else:
        tb = tb_cap
    B_pad = _round_up(rows, tb)
    x_p = pad_to(x, (B_pad, in_dim)).astype(matmul_dtype)

    grid = (B_pad // tb,)

    def batch_map(i):
        return (i, 0)

    def const_map(i):
        return (0, 0)

    kernel = functools.partial(_ac_mlp_kernel, out_dim=out_dim)

    msize = jnp.dtype(matmul_dtype).itemsize
    mac_cols = in_dim * HID_PAD + 2 * HID_PAD * HID_PAD + HID_PAD * HEAD_PAD
    cost = pl.CostEstimate(
        flops=2 * B_pad * mac_cols,
        transcendentals=B_pad * head_cols,
        bytes_accessed=B_pad * (in_dim * msize + head_cols * 4) + mac_cols * msize,
    )

    out = pl.pallas_call(
        kernel,
        out_shape=jax.ShapeDtypeStruct((B_pad, head_cols), jnp.float32),
        grid=grid,
        in_specs=[
            pl.BlockSpec((tb, in_dim), batch_map),
            pl.BlockSpec((in_dim, HID_PAD), const_map),   # w1 (VMEM-resident)
            pl.BlockSpec((1, HID_PAD), const_map),        # b1
            pl.BlockSpec((HID_PAD, HID_PAD), const_map),  # w2
            pl.BlockSpec((1, HID_PAD), const_map),        # b2
            pl.BlockSpec((HID_PAD, HID_PAD), const_map),  # w3
            pl.BlockSpec((1, HID_PAD), const_map),        # b3
            pl.BlockSpec((HID_PAD, HEAD_PAD), const_map), # fused head weight
            pl.BlockSpec((1, HEAD_PAD), const_map),       # fused head bias
        ],
        out_specs=pl.BlockSpec((tb, head_cols), batch_map),
        compiler_params=pltpu.CompilerParams(
            dimension_semantics=("parallel",),
            vmem_limit_bytes=48 * 1024 * 1024,
        ),
        cost_estimate=cost,
    )(x_p, w1, b1, w2, b2, w3, b3, wh, bh)

    probs = out[:B, :out_dim]
    value = out[:B, out_dim:out_dim + 1]
    return probs, value


def _xavier_uniform(key, fan_in, fan_out, gain):
    # matches torch.nn.init.xavier_uniform_ bound; stored as [fan_in, fan_out]
    bound = gain * math.sqrt(6.0 / (fan_in + fan_out))
    return jax.random.uniform(
        key, (fan_in, fan_out), dtype=jnp.float32, minval=-bound, maxval=bound
    )


def init_params(key, in_dim, out_dim, hidden_dim=64):
    gain = math.sqrt(2.0)  # nn.init.calculate_gain('relu')
    keys = jax.random.split(key, 5)
    return {
        "w1": _xavier_uniform(keys[0], in_dim, hidden_dim, gain),
        "b1": jnp.full((1, hidden_dim), 0.01, jnp.float32),
        "w2": _xavier_uniform(keys[1], hidden_dim, hidden_dim, gain),
        "b2": jnp.full((1, hidden_dim), 0.01, jnp.float32),
        "w3": _xavier_uniform(keys[2], hidden_dim, hidden_dim, gain),
        "b3": jnp.full((1, hidden_dim), 0.01, jnp.float32),
        "wa": _xavier_uniform(keys[3], hidden_dim, out_dim, gain),
        "ba": jnp.full((1, out_dim), 0.01, jnp.float32),
        "wc": _xavier_uniform(keys[4], hidden_dim, 1, gain),
        "bc": jnp.full((1, 1), 0.01, jnp.float32),
    }


def _reference_forward(x, p):
    # HIGHEST precision so the reference is ~exact f32 regardless of backend
    # (TPU default matmul precision is bf16-level, which previously polluted
    # the comparison).
    hp = jax.lax.Precision.HIGHEST
    h = jnp.maximum(jnp.dot(x, p["w1"], precision=hp) + p["b1"], 0.0)
    h = jnp.maximum(jnp.dot(h, p["w2"], precision=hp) + p["b2"], 0.0)
    h = jnp.maximum(jnp.dot(h, p["w3"], precision=hp) + p["b3"], 0.0)
    logits = jnp.dot(h, p["wa"], precision=hp) + p["ba"]
    probs = jax.nn.softmax(logits, axis=1)
    value = jnp.dot(h, p["wc"], precision=hp) + p["bc"]
    return probs, value


if __name__ == "__main__":
    key = jax.random.PRNGKey(0)
    k_x, k_p = jax.random.split(key)

    in_dim, hidden_dim, out_dim = 32, 64, 8
    params = init_params(k_p, in_dim, out_dim, hidden_dim)

    # --- test 1: small batch, f32 matmul operands ---------------------------
    B = 8
    x = jax.random.normal(k_x, (B, in_dim), dtype=jnp.float32)
    probs, value = ac_mlp_forward(x, params, matmul_dtype=jnp.float32)
    probs, value = jax.block_until_ready((probs, value))
    ref_probs, ref_value = _reference_forward(x, params)
    assert probs.shape == (B, out_dim) and value.shape == (B, 1)
    assert bool(jnp.all(jnp.isfinite(probs))) and bool(jnp.all(jnp.isfinite(value)))
    assert jnp.allclose(probs, ref_probs, atol=2e-2, rtol=2e-2)
    assert jnp.allclose(value, ref_value, atol=2e-2, rtol=2e-2)
    assert jnp.allclose(jnp.sum(probs, axis=1), 1.0, atol=1e-3)
    assert bool(jnp.all(probs >= 0.0))

    # --- test 2: ragged batch + multi-tile grid (pipelined path), f32 -------
    B2 = 72
    x2 = jax.random.normal(jax.random.PRNGKey(1), (B2, in_dim), dtype=jnp.float32)
    probs2, value2 = ac_mlp_forward(
        x2, params, batch_tile=32, matmul_dtype=jnp.float32)
    probs2, value2 = jax.block_until_ready((probs2, value2))
    ref_probs2, ref_value2 = _reference_forward(x2, params)
    assert probs2.shape == (B2, out_dim) and value2.shape == (B2, 1)
    assert jnp.allclose(probs2, ref_probs2, atol=2e-2, rtol=2e-2)
    assert jnp.allclose(value2, ref_value2, atol=2e-2, rtol=2e-2)
    assert jnp.allclose(jnp.sum(probs2, axis=1), 1.0, atol=1e-3)

    # --- test 3: default bf16 matmul operands (fast path), loose tolerance --
    probs3, value3 = ac_mlp_forward(x, params)
    probs3, value3 = jax.block_until_ready((probs3, value3))
    assert probs3.shape == (B, out_dim) and value3.shape == (B, 1)
    assert jnp.allclose(probs3, ref_probs, atol=1e-1, rtol=1e-1)
    assert jnp.allclose(value3, ref_value, atol=1e-1, rtol=1e-1)
    assert jnp.allclose(jnp.sum(probs3, axis=1), 1.0, atol=1e-3)

    print("KERNEL_OK")
</pallas_src>

<mosaic_0001>
module attributes {stable_mosaic.version = 11 : i64} {
  func.func @_ac_mlp_kernel(%arg0: i32, %arg1: memref<8x32xf32, #tpu.memory_space<vmem>>, %arg2: memref<32x128xf32, #tpu.memory_space<vmem>>, %arg3: memref<1x128xf32, #tpu.memory_space<vmem>>, %arg4: memref<128x128xf32, #tpu.memory_space<vmem>>, %arg5: memref<1x128xf32, #tpu.memory_space<vmem>>, %arg6: memref<128x128xf32, #tpu.memory_space<vmem>>, %arg7: memref<1x128xf32, #tpu.memory_space<vmem>>, %arg8: memref<128x128xf32, #tpu.memory_space<vmem>>, %arg9: memref<1x128xf32, #tpu.memory_space<vmem>>, %arg10: memref<8x16xf32, #tpu.memory_space<vmem>>) attributes {dimension_semantics = [#tpu.dimension_semantics<parallel>], iteration_bounds = array<i64: 1>, scalar_prefetch = 0 : i64, scratch_operands = 0 : i64, tpu.core_type = #tpu.core_type<tc>, window_params = [{transform_indices = @transform_0, window_bounds = array<i64: 8, 32>}, {pipeline_mode = #tpu.pipeline_mode<synchronous>, transform_indices = @transform_1, window_bounds = array<i64: 32, 128>}, {pipeline_mode = #tpu.pipeline_mode<synchronous>, transform_indices = @transform_2, window_bounds = array<i64: 1, 128>}, {pipeline_mode = #tpu.pipeline_mode<synchronous>, transform_indices = @transform_3, window_bounds = array<i64: 128, 128>}, {pipeline_mode = #tpu.pipeline_mode<synchronous>, transform_indices = @transform_4, window_bounds = array<i64: 1, 128>}, {pipeline_mode = #tpu.pipeline_mode<synchronous>, transform_indices = @transform_5, window_bounds = array<i64: 128, 128>}, {pipeline_mode = #tpu.pipeline_mode<synchronous>, transform_indices = @transform_6, window_bounds = array<i64: 1, 128>}, {pipeline_mode = #tpu.pipeline_mode<synchronous>, transform_indices = @transform_7, window_bounds = array<i64: 128, 128>}, {pipeline_mode = #tpu.pipeline_mode<synchronous>, transform_indices = @transform_8, window_bounds = array<i64: 1, 128>}, {transform_indices = @transform_9, window_bounds = array<i64: 8, 16>}]} {
    %c0 = arith.constant 0 : index
    %c0_0 = arith.constant 0 : index
    %0 = vector.load %arg1[%c0, %c0_0] : memref<8x32xf32, #tpu.memory_space<vmem>>, vector<8x32xf32>
    %c0_1 = arith.constant 0 : index
    %c0_2 = arith.constant 0 : index
    %1 = vector.load %arg2[%c0_1, %c0_2] : memref<32x128xf32, #tpu.memory_space<vmem>>, vector<32x128xf32>
    %cst = arith.constant dense<0.000000e+00> : vector<8x128xf32>
    %2 = tpu.matmul %0, %1, %cst {dimension_numbers = #tpu.dot_dimension_numbers<[1], [0], [0], [1], [0, 0, 1, 1], [], []>} : vector<8x32xf32>, vector<32x128xf32>, vector<8x128xf32> -> vector<8x128xf32>
    %c0_3 = arith.constant 0 : index
    %c0_4 = arith.constant 0 : index
    %3 = vector.load %arg3[%c0_3, %c0_4] : memref<1x128xf32, #tpu.memory_space<vmem>>, vector<1x128xf32>
    %4 = vector.broadcast %3 : vector<1x128xf32> to vector<8x128xf32>
    %5 = arith.addf %2, %4 : vector<8x128xf32>
    %cst_5 = arith.constant 0.000000e+00 : f32
    %6 = vector.broadcast %cst_5 : f32 to vector<8x128xf32>
    %7 = arith.maximumf %5, %6 : vector<8x128xf32>
    %c0_6 = arith.constant 0 : index
    %c0_7 = arith.constant 0 : index
    %8 = vector.load %arg4[%c0_6, %c0_7] : memref<128x128xf32, #tpu.memory_space<vmem>>, vector<128x128xf32>
    %cst_8 = arith.constant dense<0.000000e+00> : vector<8x128xf32>
    %9 = tpu.matmul %7, %8, %cst_8 {dimension_numbers = #tpu.dot_dimension_numbers<[1], [0], [0], [1], [0, 0, 1, 1], [], []>} : vector<8x128xf32>, vector<128x128xf32>, vector<8x128xf32> -> vector<8x128xf32>
    %c0_9 = arith.constant 0 : index
    %c0_10 = arith.constant 0 : index
    %10 = vector.load %arg5[%c0_9, %c0_10] : memref<1x128xf32, #tpu.memory_space<vmem>>, vector<1x128xf32>
    %11 = vector.broadcast %10 : vector<1x128xf32> to vector<8x128xf32>
    %12 = arith.addf %9, %11 : vector<8x128xf32>
    %cst_11 = arith.constant 0.000000e+00 : f32
    %13 = vector.broadcast %cst_11 : f32 to vector<8x128xf32>
    %14 = arith.maximumf %12, %13 : vector<8x128xf32>
    %c0_12 = arith.constant 0 : index
    %c0_13 = arith.constant 0 : index
    %15 = vector.load %arg6[%c0_12, %c0_13] : memref<128x128xf32, #tpu.memory_space<vmem>>, vector<128x128xf32>
    %cst_14 = arith.constant dense<0.000000e+00> : vector<8x128xf32>
    %16 = tpu.matmul %14, %15, %cst_14 {dimension_numbers = #tpu.dot_dimension_numbers<[1], [0], [0], [1], [0, 0, 1, 1], [], []>} : vector<8x128xf32>, vector<128x128xf32>, vector<8x128xf32> -> vector<8x128xf32>
    %c0_15 = arith.constant 0 : index
    %c0_16 = arith.constant 0 : index
    %17 = vector.load %arg7[%c0_15, %c0_16] : memref<1x128xf32, #tpu.memory_space<vmem>>, vector<1x128xf32>
    %18 = vector.broadcast %17 : vector<1x128xf32> to vector<8x128xf32>
    %19 = arith.addf %16, %18 : vector<8x128xf32>
    %cst_17 = arith.constant 0.000000e+00 : f32
    %20 = vector.broadcast %cst_17 : f32 to vector<8x128xf32>
    %21 = arith.maximumf %19, %20 : vector<8x128xf32>
    %c0_18 = arith.constant 0 : index
    %c0_19 = arith.constant 0 : index
    %22 = vector.load %arg8[%c0_18, %c0_19] : memref<128x128xf32, #tpu.memory_space<vmem>>, vector<128x128xf32>
    %cst_20 = arith.constant dense<0.000000e+00> : vector<8x128xf32>
    %23 = tpu.matmul %21, %22, %cst_20 {dimension_numbers = #tpu.dot_dimension_numbers<[1], [0], [0], [1], [0, 0, 1, 1], [], []>} : vector<8x128xf32>, vector<128x128xf32>, vector<8x128xf32> -> vector<8x128xf32>
    %c0_21 = arith.constant 0 : index
    %c0_22 = arith.constant 0 : index
    %24 = vector.load %arg9[%c0_21, %c0_22] : memref<1x128xf32, #tpu.memory_space<vmem>>, vector<1x128xf32>
    %25 = vector.broadcast %24 : vector<1x128xf32> to vector<8x128xf32>
    %26 = arith.addf %23, %25 : vector<8x128xf32>
    %27 = vector.extract_strided_slice %26 {offsets = [0, 0], sizes = [8, 16], strides = [1, 1]} : vector<8x128xf32> to vector<8x16xf32>
    %28 = tpu.iota {dimensions = array<i32: 1>} : vector<8x16xi32>
    %c8_i32 = arith.constant 8 : i32
    %29 = vector.broadcast %c8_i32 : i32 to vector<8x16xi32>
    %30 = arith.cmpi slt, %28, %29 : vector<8x16xi32>
    %cst_23 = arith.constant 0xFF800000 : f32
    %31 = vector.broadcast %cst_23 : f32 to vector<8x16xf32>
    %32 = arith.select %30, %27, %31 : vector<8x16xi1>, vector<8x16xf32>
    %cst_24 = arith.constant dense<0xFF800000> : vector<8xf32>
    %33 = vector.multi_reduction <maximumf>, %32, %cst_24 [1] : vector<8x16xf32> to vector<8xf32>
    %34 = vector.shape_cast %33 : vector<8xf32> to vector<8x1xf32>
    %35 = vector.broadcast %34 : vector<8x1xf32> to vector<8x16xf32>
    %36 = arith.subf %32, %35 : vector<8x16xf32>
    %37 = math.exp %36 : vector<8x16xf32>
    %cst_25 = arith.constant dense<0.000000e+00> : vector<8xf32>
    %38 = vector.multi_reduction <add>, %37, %cst_25 [1] : vector<8x16xf32> to vector<8xf32>
    %39 = vector.shape_cast %38 : vector<8xf32> to vector<8x1xf32>
    %40 = vector.broadcast %39 : vector<8x1xf32> to vector<8x16xf32>
    %41 = arith.divf %37, %40 : vector<8x16xf32>
    %c8_i32_26 = arith.constant 8 : i32
    %42 = vector.broadcast %c8_i32_26 : i32 to vector<8x16xi32>
    %43 = arith.cmpi eq, %28, %42 : vector<8x16xi32>
    %44 = arith.select %43, %27, %41 : vector<8x16xi1>, vector<8x16xf32>
    %c0_27 = arith.constant 0 : index
    %c0_28 = arith.constant 0 : index
    %45 = vector.load %arg10[%c0_27, %c0_28] : memref<8x16xf32, #tpu.memory_space<vmem>>, vector<8x16xf32>
    tpu.vector_store %arg10[%c0_27, %c0_28], %44 {strides = array<i32>} : memref<8x16xf32, #tpu.memory_space<vmem>>, vector<8x16xf32>,
    return
  }
  func.func @transform_0(%arg0: i32) -> (i32, i32) {
    %c0_i32 = arith.constant 0 : i32
    %c0_i32_0 = arith.constant 0 : i32
    return %arg0, %c0_i32 : i32, i32
  }
  func.func @transform_1(%arg0: i32) -> (i32, i32) {
    %c0_i32 = arith.constant 0 : i32
    %c0_i32_0 = arith.constant 0 : i32
    %c0_i32_1 = arith.constant 0 : i32
    return %c0_i32, %c0_i32_0 : i32, i32
  }
  func.func @transform_2(%arg0: i32) -> (i32, i32) {
    %c0_i32 = arith.constant 0 : i32
    %c0_i32_0 = arith.constant 0 : i32
    %c0_i32_1 = arith.constant 0 : i32
    return %c0_i32, %c0_i32_0 : i32, i32
  }
  func.func @transform_3(%arg0: i32) -> (i32, i32) {
    %c0_i32 = arith.constant 0 : i32
    %c0_i32_0 = arith.constant 0 : i32
    %c0_i32_1 = arith.constant 0 : i32
    return %c0_i32, %c0_i32_0 : i32, i32
  }
  func.func @transform_4(%arg0: i32) -> (i32, i32) {
    %c0_i32 = arith.constant 0 : i32
    %c0_i32_0 = arith.constant 0 : i32
    %c0_i32_1 = arith.constant 0 : i32
    return %c0_i32, %c0_i32_0 : i32, i32
  }
  func.func @transform_5(%arg0: i32) -> (i32, i32) {
    %c0_i32 = arith.constant 0 : i32
    %c0_i32_0 = arith.constant 0 : i32
    %c0_i32_1 = arith.constant 0 : i32
    return %c0_i32, %c0_i32_0 : i32, i32
  }
  func.func @transform_6(%arg0: i32) -> (i32, i32) {
    %c0_i32 = arith.constant 0 : i32
    %c0_i32_0 = arith.constant 0 : i32
    %c0_i32_1 = arith.constant 0 : i32
    return %c0_i32, %c0_i32_0 : i32, i32
  }
  func.func @transform_7(%arg0: i32) -> (i32, i32) {
    %c0_i32 = arith.constant 0 : i32
    %c0_i32_0 = arith.constant 0 : i32
    %c0_i32_1 = arith.constant 0 : i32
    return %c0_i32, %c0_i32_0 : i32, i32
  }
  func.func @transform_8(%arg0: i32) -> (i32, i32) {
    %c0_i32 = arith.constant 0 : i32
    %c0_i32_0 = arith.constant 0 : i32
    %c0_i32_1 = arith.constant 0 : i32
    return %c0_i32, %c0_i32_0 : i32, i32
  }
  func.func @transform_9(%arg0: i32) -> (i32, i32) {
    %c0_i32 = arith.constant 0 : i32
    %c0_i32_0 = arith.constant 0 : i32
    return %arg0, %c0_i32 : i32, i32
  }
}

</mosaic_0001>

<llo_original>
// kernel: tpu_custom_call.1
$region0: #{tpu_custom_call.1}
  #allocation0 [shape = 'u32[]', space=smem, size = 0x4, offset = 0x4, fixed_abs, tag = 'smem constant byte address 0x4 - core index']
  #allocation1 [shape = 'u32[144,128]{1,0:T(1,128)}', space=vmem, size = 0x12000, scoped, tag = 'internal scratch']
  %s0 = inlined_call_operand.hbm [shape: f32[8,32], index: 0, kind: input, shape index: {}]
  %s1 = inlined_call_operand.hbm [shape: f32[32,128], index: 1, kind: input, shape index: {}]
  %s2 = inlined_call_operand.vmem [shape: f32[1,128], index: 2, kind: input, shape index: {}]
  %s3 = inlined_call_operand.hbm [shape: f32[128,128], index: 3, kind: input, shape index: {}]
  %s4 = inlined_call_operand.vmem [shape: f32[1,128], index: 4, kind: input, shape index: {}]
  %s5 = inlined_call_operand.hbm [shape: f32[128,128], index: 5, kind: input, shape index: {}]
  %s6 = inlined_call_operand.vmem [shape: f32[1,128], index: 6, kind: input, shape index: {}]
  %s7 = inlined_call_operand.hbm [shape: f32[128,128], index: 7, kind: input, shape index: {}]
  %s8 = inlined_call_operand.vmem [shape: f32[1,128], index: 8, kind: input, shape index: {}]
  %s9 = inlined_call_operand.hbm [shape: f32[8,16], index: 9, kind: output, shape index: {}]
  %s10 = sld [smem:[#allocation0]]
  $region66: #{tpu_custom_call.1} parent=0
    _
  %s12 = ssub.s32 1, %s10
  %s13 = scalar_select 0, %s12, %s10
  $region1: #{tpu_custom_call.1} parent=0
    #allocation2 [shape = 'u8[4096]{0}', space=vmem, size = 0x1000, scoped, tag = 'input window, operand 0, single buffered']
    #allocation3 [shape = 's32[1]{0}', space=sflag, size = 0x4, scoped, tag = 'scoped memory for tpu_custom_call.1']
    #allocation4 [shape = 's32[1]{0}', space=sflag, size = 0x4, scoped, tag = 'scoped memory for tpu_custom_call.1']
    #allocation5 [shape = 'u8[16384]{0}', space=vmem, size = 0x4000, scoped, tag = 'input window, operand 1, single buffered']
    #allocation6 [shape = 's32[1]{0}', space=sflag, size = 0x4, scoped, tag = 'scoped memory for tpu_custom_call.1']
    #allocation7 [shape = 'u8[65536]{0}', space=vmem, size = 0x10000, scoped, tag = 'input window, operand 3, single buffered']
    #allocation8 [shape = 'u8[65536]{0}', space=vmem, size = 0x10000, scoped, tag = 'input window, operand 5, single buffered']
    #allocation9 [shape = 's32[1]{0}', space=sflag, size = 0x4, scoped, tag = 'scoped memory for tpu_custom_call.1']
    #allocation10 [shape = 'u8[65536]{0}', space=vmem, size = 0x10000, scoped, tag = 'input window, operand 7, single buffered']
    #allocation11 [shape = 'u8[4096]{0}', space=vmem, size = 0x1000, scoped, tag = 'output window, operand 0, single buffered']
    %14 = vsyncpa [#allocation3], 0
    %15 = vsyncpa [#allocation6], 0
    %16 = vsyncpa [#allocation9], 0
    %17 = vsyncpa [#allocation4], 0
    // Predicated region
    $region2: #{tpu_custom_call.1} parent=1 // pred_check
      _
    $region3: #{tpu_custom_call.1} parent=1 // pred_check_branch
      %19 = sbr.rel (0) target = $region5
    $region4: #{tpu_custom_call.1} parent=1 // pred_region
      %s21 = ssub.s32 128, 128
      %22 = vsyncadd [#allocation3], %s21
      %s24 = sshll.u32 [#allocation2], 4
      %s25 = int_to_ptr.vmem [resolvable:$true] %s24
      %27 = dma.hbm_to_vmem [thread:$0]  %s0, 128, %s25, [#allocation3]
    $region5: #{tpu_custom_call.1} parent=1 // pred_fallthru
      _
    // Predicated region
    $region6: #{tpu_custom_call.1} parent=1 // pred_check
      _
    $region7: #{tpu_custom_call.1} parent=1 // pred_check_branch
      %29 = sbr.rel (0) target = $region9
    $region8: #{tpu_custom_call.1} parent=1 // pred_region
      %s31 = ssub.s32 512, 512
      %32 = vsyncadd [#allocation6], %s31
      %s33 = sshll.u32 [#allocation5], 4
      %s34 = int_to_ptr.vmem [resolvable:$true] %s33
      %39 = dma.hbm_to_vmem [thread:$0]  %s1, 512, %s34, [#allocation6], 128, 128, 8
    $region9: #{tpu_custom_call.1} parent=1 // pred_fallthru
      _
    // Predicated region
    $region10: #{tpu_custom_call.1} parent=1 // pred_check
      _
    $region11: #{tpu_custom_call.1} parent=1 // pred_check_branch
      %41 = sbr.rel (0) target = $region13
    $region12: #{tpu_custom_call.1} parent=1 // pred_region
      _
    $region13: #{tpu_custom_call.1} parent=1 // pred_fallthru
      _
    // Predicated region
    $region14: #{tpu_custom_call.1} parent=1 // pred_check
      _
    $region15: #{tpu_custom_call.1} parent=1 // pred_check_branch
      %43 = sbr.rel (0) target = $region17
    $region16: #{tpu_custom_call.1} parent=1 // pred_region
      %s45 = ssub.s32 2048, 2048
      %46 = vsyncadd [#allocation6], %s45
      %s47 = sshll.u32 [#allocation7], 4
      %s48 = int_to_ptr.vmem [resolvable:$true] %s47
      %53 = dma.hbm_to_vmem [thread:$0]  %s3, 2048, %s48, [#allocation6], 128, 128, 8
    $region17: #{tpu_custom_call.1} parent=1 // pred_fallthru
      _
    // Predicated region
    $region18: #{tpu_custom_call.1} parent=1 // pred_check
      _
    $region19: #{tpu_custom_call.1} parent=1 // pred_check_branch
      %55 = sbr.rel (0) target = $region21
    $region20: #{tpu_custom_call.1} parent=1 // pred_region
      _
    $region21: #{tpu_custom_call.1} parent=1 // pred_fallthru
      _
    // Predicated region
    $region22: #{tpu_custom_call.1} parent=1 // pred_check
      _
    $region23: #{tpu_custom_call.1} parent=1 // pred_check_branch
      %57 = sbr.rel (0) target = $region25
    $region24: #{tpu_custom_call.1} parent=1 // pred_region
      %s59 = ssub.s32 2048, 2048
      %60 = vsyncadd [#allocation9], %s59
      %s61 = sshll.u32 [#allocation8], 4
      %s62 = int_to_ptr.vmem [resolvable:$true] %s61
      %67 = dma.hbm_to_vmem [thread:$0]  %s5, 2048, %s62, [#allocation9], 128, 128, 8
    $region25: #{tpu_custom_call.1} parent=1 // pred_fallthru
      _
    // Predicated region
    $region26: #{tpu_custom_call.1} parent=1 // pred_check
      _
    $region27: #{tpu_custom_call.1} parent=1 // pred_check_branch
      %69 = sbr.rel (0) target = $region29
    $region28: #{tpu_custom_call.1} parent=1 // pred_region
      _
    $region29: #{tpu_custom_call.1} parent=1 // pred_fallthru
      _
    // Predicated region
    $region30: #{tpu_custom_call.1} parent=1 // pred_check
      _
    $region31: #{tpu_custom_call.1} parent=1 // pred_check_branch
      %71 = sbr.rel (0) target = $region33
    $region32: #{tpu_custom_call.1} parent=1 // pred_region
      %s73 = ssub.s32 2048, 2048
      %74 = vsyncadd [#allocation9], %s73
      %s75 = sshll.u32 [#allocation10], 4
      %s76 = int_to_ptr.vmem [resolvable:$true] %s75
      %81 = dma.hbm_to_vmem [thread:$0]  %s7, 2048, %s76, [#allocation9], 128, 128, 8
    $region33: #{tpu_custom_call.1} parent=1 // pred_fallthru
      _
    // Predicated region
    $region34: #{tpu_custom_call.1} parent=1 // pred_check
      _
    $region35: #{tpu_custom_call.1} parent=1 // pred_check_branch
      %83 = sbr.rel (0) target = $region37
    $region36: #{tpu_custom_call.1} parent=1 // pred_region
      _
    $region37: #{tpu_custom_call.1} parent=1 // pred_fallthru
      _
    // Predicated region
    $region38: #{tpu_custom_call.1} parent=1 // pred_check
      _
    $region39: #{tpu_custom_call.1} parent=1 // pred_check_branch
      %85 = sbr.rel (0) target = $region41
    $region40: #{tpu_custom_call.1} parent=1 // pred_region
      %86 = dma.done [#allocation3], 128
    $region41: #{tpu_custom_call.1} parent=1 // pred_fallthru
      _
    // Predicated region
    $region42: #{tpu_custom_call.1} parent=1 // pred_check
      _
    $region43: #{tpu_custom_call.1} parent=1 // pred_check_branch
      %88 = sbr.rel (0) target = $region45
    $region44: #{tpu_custom_call.1} parent=1 // pred_region
      %89 = dma.done [#allocation6], 512
    $region45: #{tpu_custom_call.1} parent=1 // pred_fallthru
      _
    // Predicated region
    $region46: #{tpu_custom_call.1} parent=1 // pred_check
      _
    $region47: #{tpu_custom_call.1} parent=1 // pred_check_branch
      %91 = sbr.rel (0) target = $region49
    $region48: #{tpu_custom_call.1} parent=1 // pred_region
      %92 = dma.done [#allocation6], 2048
    $region49: #{tpu_custom_call.1} parent=1 // pred_fallthru
      _
    // Predicated region
    $region50: #{tpu_custom_call.1} parent=1 // pred_check
      _
    $region51: #{tpu_custom_call.1} parent=1 // pred_check_branch
      %94 = sbr.rel (0) target = $region53
    $region52: #{tpu_custom_call.1} parent=1 // pred_region
      %95 = dma.done [#allocation9], 2048
    $region53: #{tpu_custom_call.1} parent=1 // pred_fallthru
      _
    // Predicated region
    $region54: #{tpu_custom_call.1} parent=1 // pred_check
      _
    $region55: #{tpu_custom_call.1} parent=1 // pred_check_branch
      %97 = sbr.rel (0) target = $region57
    $region56: #{tpu_custom_call.1} parent=1 // pred_region
      %98 = dma.done [#allocation9], 2048
    $region57: #{tpu_custom_call.1} parent=1 // pred_fallthru
      _
    %v99 = vld [vmem:[#allocation2] sm:$0xff]
    %v100 = vld [vmem:[#allocation5] sm:$0xff]
    %v101 = vld [vmem:[#allocation5 + $0x8] sm:$0xff]
    %v102 = vld [vmem:[#allocation5 + $0x10] sm:$0xff]
    %v103 = vld [vmem:[#allocation5 + $0x18] sm:$0xff]
    %v104 = vld [vmem:[%s2] sm:$0x1]
    %v106 = vlaneseq
    %v107 = vshrl.u32 %v106, 7
    %v108 = vsub.s32 0, %v107
    %v109 = vrot.slane %v104, %v108
    %vm111 = vcmask 261120
    %v113 = vsel %vm111, %v99, 0
    %115 = vmatprep.subr.mxu0 0.0
    %116 = vmatpush1.msra.mxu0 %v100
    %117 = vmatprep.subr.mxu0 0.0
    %118 = vmatpush1.msra.mxu0 %v101
    %119 = vmatprep.subr.mxu0 0.0
    %120 = vmatpush1.msra.mxu0 %v102
    %121 = vmatprep.subr.mxu0 0.0
    %122 = vmatpush1.msra.mxu0 %v103
    %123 = vmatprep.subr.mxu0 0.0
    %124 = vmatpush1.msra.mxu0 0.0
    %125 = vmatprep.subr.mxu0 0.0
    %126 = vmatpush1.msra.mxu0 0.0
    %127 = vmatprep.subr.mxu0 0.0
    %128 = vmatpush1.msra.mxu0 0.0
    %129 = vmatprep.subr.mxu0 0.0
    %130 = vmatpush1.msra.mxu0 0.0
    %131 = vmatprep.subr.mxu0 0.0
    %132 = vmatpush1.msra.mxu0 0.0
    %133 = vmatprep.subr.mxu0 0.0
    %134 = vmatpush1.msra.mxu0 0.0
    %135 = vmatprep.subr.mxu0 0.0
    %136 = vmatpush1.msra.mxu0 0.0
    %137 = vmatprep.subr.mxu0 0.0
    %138 = vmatpush1.msra.mxu0 0.0
    %139 = vmatprep.subr.mxu0 0.0
    %140 = vmatpush1.msra.mxu0 0.0
    %141 = vmatprep.subr.mxu0 0.0
    %142 = vmatpush1.msra.mxu0 0.0
    %143 = vmatprep.subr.mxu0 0.0
    %144 = vmatpush1.msra.mxu0 0.0
    %145 = vmatprep.subr.mxu0 0.0
    %146 = vmatpush1.msra.mxu0 0.0
    %147 = vmatprep.subr.mxu0 0.0
    %148 = vmatpush1.msra.mxu0 0.0
    %149 = vmatprep.subr.mxu0 0.0
    %150 = vmatpush1.msra.mxu0 0.0
    %151 = vmatprep.subr.mxu0 0.0
    %152 = vmatpush1.msra.mxu0 0.0
    %153 = vmatprep.subr.mxu0 0.0
    %154 = vmatpush1.msra.mxu0 0.0
    %155 = vmatprep.subr.mxu0 0.0
    %156 = vmatpush1.msra.mxu0 0.0
    %157 = vmatprep.subr.mxu0 0.0
    %158 = vmatpush1.msra.mxu0 0.0
    %159 = vmatprep.subr.mxu0 0.0
    %160 = vmatpush1.msra.mxu0 0.0
    %161 = vmatprep.subr.mxu0 0.0
    %162 = vmatpush1.msra.mxu0 0.0
    %163 = vmatprep.subr.mxu0 0.0
    %164 = vmatpush1.msra.mxu0 0.0
    %165 = vmatprep.subr.mxu0 0.0
    %166 = vmatpush1.msra.mxu0 0.0
    %167 = vmatprep.subr.mxu0 0.0
    %168 = vmatpush1.msra.mxu0 0.0
    %169 = vmatprep.subr.mxu0 0.0
    %170 = vmatpush1.msra.mxu0 0.0
    %171 = vmatprep.subr.mxu0 0.0
    %172 = vmatpush1.msra.mxu0 0.0
    %173 = vmatprep.subr.mxu0 0.0
    %174 = vmatpush1.msra.mxu0 0.0
    %175 = vmatprep.subr.mxu0 0.0
    %176 = vmatpush1.msra.mxu0 0.0
    %177 = vmatprep.subr.mxu0 0.0
    %178 = vmatpush1.msra.mxu0 0.0
    %179 = vmatprep.mubr.f32.mxu0 0.0
    %180 = vmatmul.mubr.f32.gmra.mrb[0].mxu0 %v113
    %v181 = vpop.f32.mrb[0].mxu0
    %v182 = vadd.f32 %v109, %v181
    %v183 = vpop.f32.mrb[0].mxu0
    %184 = vdwg.mxu0
    %v185 = vmax.f32 %v182, 0.0
    %v186 = vld [vmem:[#allocation7] sm:$0xff]
    %v187 = vld [vmem:[#allocation7 + $0x8] sm:$0xff]
    %v188 = vld [vmem:[#allocation7 + $0x10] sm:$0xff]
    %v189 = vld [vmem:[#allocation7 + $0x18] sm:$0xff]
    %v190 = vld [vmem:[#allocation7 + $0x20] sm:$0xff]
    %v191 = vld [vmem:[#allocation7 + $0x28] sm:$0xff]
    %v192 = vld [vmem:[#allocation7 + $0x30] sm:$0xff]
    %v193 = vld [vmem:[#allocation7 + $0x38] sm:$0xff]
    %v194 = vld [vmem:[#allocation7 + $0x40] sm:$0xff]
    %v195 = vld [vmem:[#allocation7 + $0x48] sm:$0xff]
    %v196 = vld [vmem:[#allocation7 + $0x50] sm:$0xff]
    %v197 = vld [vmem:[#allocation7 + $0x58] sm:$0xff]
    %v198 = vld [vmem:[#allocation7 + $0x60] sm:$0xff]
    %v199 = vld [vmem:[#allocation7 + $0x68] sm:$0xff]
    %v200 = vld [vmem:[#allocation7 + $0x70] sm:$0xff]
    %v201 = vld [vmem:[#allocation7 + $0x78] sm:$0xff]
    %v202 = vld [vmem:[%s4] sm:$0x1]
    %v204 = vlaneseq
    %v205 = vshrl.u32 %v204, 7
    %v206 = vsub.s32 0, %v205
    %v207 = vrot.slane %v202, %v206
    %209 = vmatprep.subr.mxu0 0.0
    %210 = vmatpush1.msra.mxu0 %v186
    %211 = vmatprep.subr.mxu0 0.0
    %212 = vmatpush1.msra.mxu0 %v187
    %213 = vmatprep.subr.mxu0 0.0
    %214 = vmatpush1.msra.mxu0 %v188
    %215 = vmatprep.subr.mxu0 0.0
    %216 = vmatpush1.msra.mxu0 %v189
    %217 = vmatprep.subr.mxu0 0.0
    %218 = vmatpush1.msra.mxu0 %v190
    %219 = vmatprep.subr.mxu0 0.0
    %220 = vmatpush1.msra.mxu0 %v191
    %221 = vmatprep.subr.mxu0 0.0
    %222 = vmatpush1.msra.mxu0 %v192
    %223 = vmatprep.subr.mxu0 0.0
    %224 = vmatpush1.msra.mxu0 %v193
    %225 = vmatprep.subr.mxu0 0.0
    %226 = vmatpush1.msra.mxu0 %v194
    %227 = vmatprep.subr.mxu0 0.0
    %228 = vmatpush1.msra.mxu0 %v195
    %229 = vmatprep.subr.mxu0 0.0
    %230 = vmatpush1.msra.mxu0 %v196
    %231 = vmatprep.subr.mxu0 0.0
    %232 = vmatpush1.msra.mxu0 %v197
    %233 = vmatprep.subr.mxu0 0.0
    %234 = vmatpush1.msra.mxu0 %v198
    %235 = vmatprep.subr.mxu0 0.0
    %236 = vmatpush1.msra.mxu0 %v199
    %237 = vmatprep.subr.mxu0 0.0
    %238 = vmatpush1.msra.mxu0 %v200
    %239 = vmatprep.subr.mxu0 0.0
    %240 = vmatpush1.msra.mxu0 %v201
    %241 = vmatprep.subr.mxu0 0.0
    %242 = vmatpush1.msra.mxu0 0.0
    %243 = vmatprep.subr.mxu0 0.0
    %244 = vmatpush1.msra.mxu0 0.0
    %245 = vmatprep.subr.mxu0 0.0
    %246 = vmatpush1.msra.mxu0 0.0
    %247 = vmatprep.subr.mxu0 0.0
    %248 = vmatpush1.msra.mxu0 0.0
    %249 = vmatprep.subr.mxu0 0.0
    %250 = vmatpush1.msra.mxu0 0.0
    %251 = vmatprep.subr.mxu0 0.0
    %252 = vmatpush1.msra.mxu0 0.0
    %253 = vmatprep.subr.mxu0 0.0
    %254 = vmatpush1.msra.mxu0 0.0
    %255 = vmatprep.subr.mxu0 0.0
    %256 = vmatpush1.msra.mxu0 0.0
    %257 = vmatprep.subr.mxu0 0.0
    %258 = vmatpush1.msra.mxu0 0.0
    %259 = vmatprep.subr.mxu0 0.0
    %260 = vmatpush1.msra.mxu0 0.0
    %261 = vmatprep.subr.mxu0 0.0
    %262 = vmatpush1.msra.mxu0 0.0
    %263 = vmatprep.subr.mxu0 0.0
    %264 = vmatpush1.msra.mxu0 0.0
    %265 = vmatprep.subr.mxu0 0.0
    %266 = vmatpush1.msra.mxu0 0.0
    %267 = vmatprep.subr.mxu0 0.0
    %268 = vmatpush1.msra.mxu0 0.0
    %269 = vmatprep.subr.mxu0 0.0
    %270 = vmatpush1.msra.mxu0 0.0
    %271 = vmatprep.subr.mxu0 0.0
    %272 = vmatpush1.msra.mxu0 0.0
    %273 = vmatprep.mubr.f32.mxu0 0.0
    %274 = vmatmul.mubr.f32.gmra.mrb[0].mxu0 %v185
    %v275 = vpop.f32.mrb[0].mxu0
    %v276 = vadd.f32 %v207, %v275
    %v277 = vpop.f32.mrb[0].mxu0
    %278 = vdwg.mxu0
    %v279 = vmax.f32 %v276, 0.0
    %v280 = vld [vmem:[#allocation8] sm:$0xff]
    %v281 = vld [vmem:[#allocation8 + $0x8] sm:$0xff]
    %v282 = vld [vmem:[#allocation8 + $0x10] sm:$0xff]
    %v283 = vld [vmem:[#allocation8 + $0x18] sm:$0xff]
    %v284 = vld [vmem:[#allocation8 + $0x20] sm:$0xff]
    %v285 = vld [vmem:[#allocation8 + $0x28] sm:$0xff]
    %v286 = vld [vmem:[#allocation8 + $0x30] sm:$0xff]
    %v287 = vld [vmem:[#allocation8 + $0x38] sm:$0xff]
    %v288 = vld [vmem:[#allocation8 + $0x40] sm:$0xff]
    %v289 = vld [vmem:[#allocation8 + $0x48] sm:$0xff]
    %v290 = vld [vmem:[#allocation8 + $0x50] sm:$0xff]
    %v291 = vld [vmem:[#allocation8 + $0x58] sm:$0xff]
    %v292 = vld [vmem:[#allocation8 + $0x60] sm:$0xff]
    %v293 = vld [vmem:[#allocation8 + $0x68] sm:$0xff]
    %v294 = vld [vmem:[#allocation8 + $0x70] sm:$0xff]
    %v295 = vld [vmem:[#allocation8 + $0x78] sm:$0xff]
    %v296 = vld [vmem:[%s6] sm:$0x1]
    %v298 = vlaneseq
    %v299 = vshrl.u32 %v298, 7
    %v300 = vsub.s32 0, %v299
    %v301 = vrot.slane %v296, %v300
    %303 = vmatprep.subr.mxu0 0.0
    %304 = vmatpush1.msra.mxu0 %v280
    %305 = vmatprep.subr.mxu0 0.0
    %306 = vmatpush1.msra.mxu0 %v281
    %307 = vmatprep.subr.mxu0 0.0
    %308 = vmatpush1.msra.mxu0 %v282
    %309 = vmatprep.subr.mxu0 0.0
    %310 = vmatpush1.msra.mxu0 %v283
    %311 = vmatprep.subr.mxu0 0.0
    %312 = vmatpush1.msra.mxu0 %v284
    %313 = vmatprep.subr.mxu0 0.0
    %314 = vmatpush1.msra.mxu0 %v285
    %315 = vmatprep.subr.mxu0 0.0
    %316 = vmatpush1.msra.mxu0 %v286
    %317 = vmatprep.subr.mxu0 0.0
    %318 = vmatpush1.msra.mxu0 %v287
    %319 = vmatprep.subr.mxu0 0.0
    %320 = vmatpush1.msra.mxu0 %v288
    %321 = vmatprep.subr.mxu0 0.0
    %322 = vmatpush1.msra.mxu0 %v289
    %323 = vmatprep.subr.mxu0 0.0
    %324 = vmatpush1.msra.mxu0 %v290
    %325 = vmatprep.subr.mxu0 0.0
    %326 = vmatpush1.msra.mxu0 %v291
    %327 = vmatprep.subr.mxu0 0.0
    %328 = vmatpush1.msra.mxu0 %v292
    %329 = vmatprep.subr.mxu0 0.0
    %330 = vmatpush1.msra.mxu0 %v293
    %331 = vmatprep.subr.mxu0 0.0
    %332 = vmatpush1.msra.mxu0 %v294
    %333 = vmatprep.subr.mxu0 0.0
    %334 = vmatpush1.msra.mxu0 %v295
    %335 = vmatprep.subr.mxu0 0.0
    %336 = vmatpush1.msra.mxu0 0.0
    %337 = vmatprep.subr.mxu0 0.0
    %338 = vmatpush1.msra.mxu0 0.0
    %339 = vmatprep.subr.mxu0 0.0
    %340 = vmatpush1.msra.mxu0 0.0
    %341 = vmatprep.subr.mxu0 0.0
    %342 = vmatpush1.msra.mxu0 0.0
    %343 = vmatprep.subr.mxu0 0.0
    %344 = vmatpush1.msra.mxu0 0.0
    %345 = vmatprep.subr.mxu0 0.0
    %346 = vmatpush1.msra.mxu0 0.0
    %347 = vmatprep.subr.mxu0 0.0
    %348 = vmatpush1.msra.mxu0 0.0
    %349 = vmatprep.subr.mxu0 0.0
    %350 = vmatpush1.msra.mxu0 0.0
    %351 = vmatprep.subr.mxu0 0.0
    %352 = vmatpush1.msra.mxu0 0.0
    %353 = vmatprep.subr.mxu0 0.0
    %354 = vmatpush1.msra.mxu0 0.0
    %355 = vmatprep.subr.mxu0 0.0
    %356 = vmatpush1.msra.mxu0 0.0
    %357 = vmatprep.subr.mxu0 0.0
    %358 = vmatpush1.msra.mxu0 0.0
    %359 = vmatprep.subr.mxu0 0.0
    %360 = vmatpush1.msra.mxu0 0.0
    %361 = vmatprep.subr.mxu0 0.0
    %362 = vmatpush1.msra.mxu0 0.0
    %363 = vmatprep.subr.mxu0 0.0
    %364 = vmatpush1.msra.mxu0 0.0
    %365 = vmatprep.subr.mxu0 0.0
    %366 = vmatpush1.msra.mxu0 0.0
    %367 = vmatprep.mubr.f32.mxu0 0.0
    %368 = vmatmul.mubr.f32.gmra.mrb[0].mxu0 %v279
    %v369 = vpop.f32.mrb[0].mxu0
    %v370 = vadd.f32 %v301, %v369
    %v371 = vpop.f32.mrb[0].mxu0
    %372 = vdwg.mxu0
    %v373 = vmax.f32 %v370, 0.0
    %v374 = vld [vmem:[#allocation10] sm:$0xff]
    %v375 = vld [vmem:[#allocation10 + $0x8] sm:$0xff]
    %v376 = vld [vmem:[#allocation10 + $0x10] sm:$0xff]
    %v377 = vld [vmem:[#allocation10 + $0x18] sm:$0xff]
    %v378 = vld [vmem:[#allocation10 + $0x20] sm:$0xff]
    %v379 = vld [vmem:[#allocation10 + $0x28] sm:$0xff]
    %v380 = vld [vmem:[#allocation10 + $0x30] sm:$0xff]
    %v381 = vld [vmem:[#allocation10 + $0x38] sm:$0xff]
    %v382 = vld [vmem:[#allocation10 + $0x40] sm:$0xff]
    %v383 = vld [vmem:[#allocation10 + $0x48] sm:$0xff]
    %v384 = vld [vmem:[#allocation10 + $0x50] sm:$0xff]
    %v385 = vld [vmem:[#allocation10 + $0x58] sm:$0xff]
    %v386 = vld [vmem:[#allocation10 + $0x60] sm:$0xff]
    %v387 = vld [vmem:[#allocation10 + $0x68] sm:$0xff]
    %v388 = vld [vmem:[#allocation10 + $0x70] sm:$0xff]
    %v389 = vld [vmem:[#allocation10 + $0x78] sm:$0xff]
    %v390 = vld [vmem:[%s8] sm:$0x1]
    %v392 = vlaneseq
    %v393 = vshrl.u32 %v392, 7
    %v394 = vsub.s32 0, %v393
    %v395 = vrot.slane %v390, %v394
    %397 = vmatprep.subr.mxu0 0.0
    %398 = vmatpush1.msra.mxu0 %v374
    %399 = vmatprep.subr.mxu0 0.0
    %400 = vmatpush1.msra.mxu0 %v375
    %401 = vmatprep.subr.mxu0 0.0
    %402 = vmatpush1.msra.mxu0 %v376
    %403 = vmatprep.subr.mxu0 0.0
    %404 = vmatpush1.msra.mxu0 %v377
    %405 = vmatprep.subr.mxu0 0.0
    %406 = vmatpush1.msra.mxu0 %v378
    %407 = vmatprep.subr.mxu0 0.0
    %408 = vmatpush1.msra.mxu0 %v379
    %409 = vmatprep.subr.mxu0 0.0
    %410 = vmatpush1.msra.mxu0 %v380
    %411 = vmatprep.subr.mxu0 0.0
    %412 = vmatpush1.msra.mxu0 %v381
    %413 = vmatprep.subr.mxu0 0.0
    %414 = vmatpush1.msra.mxu0 %v382
    %415 = vmatprep.subr.mxu0 0.0
    %416 = vmatpush1.msra.mxu0 %v383
    %417 = vmatprep.subr.mxu0 0.0
    %418 = vmatpush1.msra.mxu0 %v384
    %419 = vmatprep.subr.mxu0 0.0
    %420 = vmatpush1.msra.mxu0 %v385
    %421 = vmatprep.subr.mxu0 0.0
    %422 = vmatpush1.msra.mxu0 %v386
    %423 = vmatprep.subr.mxu0 0.0
    %424 = vmatpush1.msra.mxu0 %v387
    %425 = vmatprep.subr.mxu0 0.0
    %426 = vmatpush1.msra.mxu0 %v388
    %427 = vmatprep.subr.mxu0 0.0
    %428 = vmatpush1.msra.mxu0 %v389
    %429 = vmatprep.subr.mxu0 0.0
    %430 = vmatpush1.msra.mxu0 0.0
    %431 = vmatprep.subr.mxu0 0.0
    %432 = vmatpush1.msra.mxu0 0.0
    %433 = vmatprep.subr.mxu0 0.0
    %434 = vmatpush1.msra.mxu0 0.0
    %435 = vmatprep.subr.mxu0 0.0
    %436 = vmatpush1.msra.mxu0 0.0
    %437 = vmatprep.subr.mxu0 0.0
    %438 = vmatpush1.msra.mxu0 0.0
    %439 = vmatprep.subr.mxu0 0.0
    %440 = vmatpush1.msra.mxu0 0.0
    %441 = vmatprep.subr.mxu0 0.0
    %442 = vmatpush1.msra.mxu0 0.0
    %443 = vmatprep.subr.mxu0 0.0
    %444 = vmatpush1.msra.mxu0 0.0
    %445 = vmatprep.subr.mxu0 0.0
    %446 = vmatpush1.msra.mxu0 0.0
    %447 = vmatprep.subr.mxu0 0.0
    %448 = vmatpush1.msra.mxu0 0.0
    %449 = vmatprep.subr.mxu0 0.0
    %450 = vmatpush1.msra.mxu0 0.0
    %451 = vmatprep.subr.mxu0 0.0
    %452 = vmatpush1.msra.mxu0 0.0
    %453 = vmatprep.subr.mxu0 0.0
    %454 = vmatpush1.msra.mxu0 0.0
    %455 = vmatprep.subr.mxu0 0.0
    %456 = vmatpush1.msra.mxu0 0.0
    %457 = vmatprep.subr.mxu0 0.0
    %458 = vmatpush1.msra.mxu0 0.0
    %459 = vmatprep.subr.mxu0 0.0
    %460 = vmatpush1.msra.mxu0 0.0
    %461 = vmatprep.mubr.f32.mxu0 0.0
    %462 = vmatmul.mubr.f32.gmra.mrb[0].mxu0 %v373
    %v463 = vpop.f32.mrb[0].mxu0
    %v464 = vadd.f32 %v395, %v463
    %v465 = vpop.f32.mrb[0].mxu0
    %466 = vdwg.mxu0
    %v467 = vlaneseq
    %v468 = vand.u32 %v467, 127
    %vm469 = vcmp.lt.s32.totalorder %v468, 8
    %v470 = vsel %vm469, %v464, -inf
    %vm471 = vcmask 130048
    %v472 = vsel %vm471, %v470, -inf
    %473 = vmax.xlane.f32.xlu0 %v472
    %v474 = vpop.xlane.xlu0 %473
    %v475 = vsub.f32 %v470, %v474
    %v476 = vmul.f32 %v475, 1.442695
    %v477 = vpow.pop %v476
    %v478 = vsel %vm471, %v477, 0.0
    %479 = vadd.xlane.f32.xlu0 %v478
    %v480 = vpop.xlane.xlu0 %479
    %v481 = vrcp.pop %v480
    %v482 = vmul.f32 %v477, %v481
    %vm483 = vcmp.eq.s32.totalorder %v468, 8
    %v484 = vsel %vm483, %v464, %v482
    %485 = vst.msk [vmem:[#allocation11] sm:$0xff] %vm471, %v484
    // Predicated region
    $region58: #{tpu_custom_call.1} parent=1 // pred_check
      _
    $region59: #{tpu_custom_call.1} parent=1 // pred_check_branch
      %487 = sbr.rel (0) target = $region61
    $region60: #{tpu_custom_call.1} parent=1 // pred_region
      %s489 = ssub.s32 128, 128
      %490 = vsyncadd [#allocation4], %s489
      %s492 = sshll.u32 [#allocation11], 4
      %s493 = int_to_ptr.vmem [resolvable:$true] %s492
      %495 = dma.vmem_to_hbm [thread:$0]  %s493, 128, %s9, [#allocation4]
    $region61: #{tpu_custom_call.1} parent=1 // pred_fallthru
      _
    // Predicated region
    $region62: #{tpu_custom_call.1} parent=1 // pred_check
      _
    $region63: #{tpu_custom_call.1} parent=1 // pred_check_branch
      %497 = sbr.rel (0) target = $region65
    $region64: #{tpu_custom_call.1} parent=1 // pred_region
      %498 = dma.done [#allocation4], 128
    $region65: #{tpu_custom_call.1} parent=1 // pred_fallthru
      _
    %499 = vsyncpa [#allocation3], 1
    %500 = vsyncpa [#allocation6], 1
    %501 = vsyncpa [#allocation9], 1
    %502 = vsyncpa [#allocation4], 1

</llo_original>
